<compile_context>
chip_gen: v5e
topology: v5e:2x2
jax: 0.10.0
libtpu: 0.0.40
codegen_flags: <defaults>
</compile_context>

<pallas_src>
import functools

import jax
import jax.numpy as jnp
from jax import lax
from jax.experimental import pallas as pl
from jax.experimental.pallas import tpu as pltpu

TEMP = 0.05            # ClusterMemory default temp
INV_TEMP = 1.0 / TEMP
MOMENTUM = 0.2         # only used in CM.backward (memory update) -> not in fwd


def cluster_memory_kernel(x_ref, feat_ref, tgt_ref, logits_ref, loss_ref,
                          xn_ref, m_ref, l_ref, picked_ref):
    """Grid = (B tiles, N tiles). Streaming cross-entropy over the N axis."""
    n = pl.program_id(1)
    n_last = pl.num_programs(1) - 1
    tb, tn = logits_ref.shape

    # ---- once per B-tile: normalize rows (fold 1/temp in), reset state -----
    @pl.when(n == 0)
    def _init():
        x = x_ref[...].astype(jnp.float32)                       # (TB, Dp)
        sumsq = jnp.sum(x * x, axis=1, keepdims=True)
        # F.normalize(x, dim=1) == x / max(||x||, 1e-12); rsqrt goes to EUP.
        xn = x * lax.rsqrt(jnp.maximum(sumsq, 1e-24))
        # Fold 1/temp here (f32) so the per-N-tile (TB,TN) multiply is gone.
        xn_ref[...] = (xn * INV_TEMP).astype(xn_ref.dtype)       # cached bf16
        m_ref[...] = jnp.full_like(m_ref, -jnp.inf)
        l_ref[...] = jnp.zeros_like(l_ref)
        picked_ref[...] = jnp.zeros_like(picked_ref)

    # ---- MXU: (TB, Dp) x (TN, Dp) contracted on Dp -> (TB, TN), f32 acc ----
    logits = lax.dot_general(
        xn_ref[...], feat_ref[...],
        dimension_numbers=(((1,), (1,)), ((), ())),
        preferred_element_type=jnp.float32)
    logits_ref[...] = logits.astype(logits_ref.dtype)            # bf16 writeback

    # ---- online logsumexp over the tiled cluster axis ----------------------
    tile_max = jnp.max(logits, axis=1, keepdims=True)
    m_new = jnp.maximum(m_ref[...], tile_max)
    l_ref[...] = (l_ref[...] * jnp.exp(m_ref[...] - m_new)
                  + jnp.sum(jnp.exp(logits - m_new), axis=1, keepdims=True))
    m_ref[...] = m_new

    # ---- pick logits[i, target_i] (f32, global column index) ---------------
    col = lax.broadcasted_iota(jnp.int32, (tb, tn), 1) + n * tn
    hit = col == tgt_ref[...]                                    # (TB, TN)
    picked_ref[...] += jnp.sum(jnp.where(hit, logits, 0.0), axis=1,
                               keepdims=True)

    # ---- finalize: per-row cross-entropy = logsumexp - picked --------------
    @pl.when(n == n_last)
    def _finalize():
        loss_ref[...] = m_ref[...] + jnp.log(l_ref[...]) - picked_ref[...]


# ------------------------- static tiling helpers -----------------------------

def _vmem_capacity_bytes():
    try:
        cap = getattr(pltpu.get_tpu_info(), "vmem_capacity_bytes", None)
        if cap:
            return int(cap)
    except Exception:
        pass
    return 64 << 20  # conservative fallback (v7x per-TC physical VMEM)


def _pick_tb(B):
    """Prefer large TB (HBM intensity), but leave >=2 tiles for megacore when
    that still keeps TB >= 128. tb=8 dropped (bf16 sublane packing)."""
    cands = (1024, 512, 256, 128, 64, 32, 16)
    div = [c for c in cands if B % c == 0]
    if not div:
        return B
    for c in div:
        if c >= 128 and B // c >= 2:
            return c
    return div[0]


def _pick_tn(N, Dp, budget):
    """Whole feature matrix VMEM-resident (tn = N, n-extent 1) when it fits;
    otherwise a lane-dense streaming tile."""
    if N * Dp * 2 <= min(budget // 4, 16 << 20):
        return N
    for c in (512, 256, 128):
        if N % c == 0:
            return c
    return N


def _vmem_estimate(tb, tn, Dp, out_itemsize):
    return (2 * tb * Dp * 2                 # x in (bf16, double-buffered)
            + 2 * tn * Dp * 2               # features in
            + 2 * tb * tn * out_itemsize    # logits out
            + 2 * tb * 4 * 2                # targets + per-row loss
            + tb * Dp * 2 + 3 * tb * 4)     # scratch (xn cache + m/l/picked)


@functools.partial(jax.jit, static_argnames=("tb", "tn", "logits_dtype"))
def cluster_memory_forward(bn_global_x, features, targets, *, tb=None, tn=None,
                           logits_dtype=jnp.bfloat16):
    """Returns (loss, outputs) like ClusterMemory.forward (use_hard=False)."""
    B, D = bn_global_x.shape
    N, Df = features.shape
    assert D == Df

    # bf16 on the HBM-bound streams; MXU accumulates in f32.
    x_bf = bn_global_x.astype(jnp.bfloat16)
    feat_bf = features.astype(jnp.bfloat16)
    # Pad the contraction dim to a multiple of 128 (dense vregs / MXU pushes).
    Dp = ((D + 127) // 128) * 128
    if Dp != D:
        x_bf = jnp.pad(x_bf, ((0, 0), (0, Dp - D)))
        feat_bf = jnp.pad(feat_bf, ((0, 0), (0, Dp - D)))
    tgt2d = targets.reshape(B, 1).astype(jnp.int32)
    out_itemsize = jnp.dtype(logits_dtype).itemsize

    # ---- per-generation VMEM budgeting (v5e 16 MiB scoped default, v7x
    # 64 MiB physical, v6e 128 MiB physical) ---------------------------------
    cap = _vmem_capacity_bytes()
    budget = int(cap * 0.7)
    if tb is None:
        tb = _pick_tb(B)
    if tn is None:
        tn = _pick_tn(N, Dp, budget)
    while (_vmem_estimate(tb, tn, Dp, out_itemsize) > budget
           and tb > 16 and tb % 2 == 0 and B % (tb // 2) == 0):
        tb //= 2
    assert B % tb == 0 and N % tn == 0
    grid = (B // tb, N // tn)

    est = _vmem_estimate(tb, tn, Dp, out_itemsize)
    vmem_limit = int(min(cap - (4 << 20),
                         max(32 << 20, est + est // 2 + (4 << 20))))

    feat_resident = (grid[1] == 1)
    feat_stream_bytes = N * Dp * 2 if feat_resident else grid[0] * N * Dp * 2
    cost = pl.CostEstimate(
        flops=2 * B * N * Dp,
        transcendentals=B * N,                      # exp in the online softmax
        bytes_accessed=(B * Dp * 2 + feat_stream_bytes
                        + B * N * out_itemsize + B * 4 + B * 4))

    # NOTE: if a trace shows DMA gaps at B-tile boundaries once compute-bound,
    # add pipeline_mode=pl.Buffered(3) on the features BlockSpec only.
    logits, per_row_loss = pl.pallas_call(
        cluster_memory_kernel,
        out_shape=(
            jax.ShapeDtypeStruct((B, N), logits_dtype),
            jax.ShapeDtypeStruct((B, 1), jnp.float32),
        ),
        grid_spec=pltpu.PrefetchScalarGridSpec(
            num_scalar_prefetch=0,
            grid=grid,
            in_specs=[
                pl.BlockSpec((tb, Dp), lambda b, n: (b, 0)),   # x (bf16)
                pl.BlockSpec((tn, Dp), lambda b, n: (n, 0)),   # features (bf16)
                pl.BlockSpec((tb, 1), lambda b, n: (b, 0)),    # targets (int32)
            ],
            out_specs=(
                pl.BlockSpec((tb, tn), lambda b, n: (b, n)),   # logits
                pl.BlockSpec((tb, 1), lambda b, n: (b, 0)),    # per-row loss
            ),
            scratch_shapes=[
                pltpu.VMEM((tb, Dp), jnp.bfloat16),  # cached (xn / temp) rows
                pltpu.VMEM((tb, 1), jnp.float32),    # running max  m_i
                pltpu.VMEM((tb, 1), jnp.float32),    # running sum  l_i
                pltpu.VMEM((tb, 1), jnp.float32),    # picked target logit
            ],
        ),
        compiler_params=pltpu.CompilerParams(
            # B tiles independent (megacore on v7x); N is the streaming axis.
            dimension_semantics=("parallel", "arbitrary"),
            vmem_limit_bytes=vmem_limit,
        ),
        cost_estimate=cost,
    )(x_bf, feat_bf, tgt2d)

    # NOTE: out-of-range targets are silently absorbed (picked stays 0);
    # PyTorch's cross_entropy would raise. Validate targets upstream if needed.
    loss = jnp.mean(per_row_loss[:, 0])
    return loss, logits


def _reference(bn_global_x, features, targets):
    """Pure-JAX reference mirroring the kernel's bf16 data path."""
    x = bn_global_x.astype(jnp.bfloat16).astype(jnp.float32)
    sumsq = jnp.sum(x * x, axis=1, keepdims=True)
    xn = x * lax.rsqrt(jnp.maximum(sumsq, 1e-24))
    xn = (xn * INV_TEMP).astype(jnp.bfloat16).astype(jnp.float32)
    feat = features.astype(jnp.bfloat16).astype(jnp.float32)
    logits = xn @ feat.T
    lse = jax.scipy.special.logsumexp(logits, axis=1)
    picked = jnp.take_along_axis(logits, targets[:, None], axis=1)[:, 0]
    return jnp.mean(lse - picked), logits


if __name__ == "__main__":
    # Small shapes: batch=32, features=96 (pads to 128), clusters=512.
    B, D, N = 32, 96, 512
    key = jax.random.PRNGKey(0)
    kx, kf, kt = jax.random.split(key, 3)

    bn_global_x = jax.random.normal(kx, (B, D), dtype=jnp.float32)
    # Module __init__ registers features = zeros(num_samples, num_features);
    # zeros give a degenerate all-zero logit matrix, so we fill the cluster
    # memory with unit-normalized random rows (synthetic init).
    features = jax.random.normal(kf, (N, D), dtype=jnp.float32)
    features = features / jnp.linalg.norm(features, axis=1, keepdims=True)
    targets = jax.random.randint(kt, (B,), 0, N, dtype=jnp.int32)

    ref_loss, ref_out = _reference(bn_global_x, features, targets)

    # Config 1: auto tiling (features VMEM-resident, n-extent = 1).
    loss, outputs = cluster_memory_forward(bn_global_x, features, targets)
    jax.block_until_ready((loss, outputs))
    assert outputs.shape == (B, N)
    assert jnp.allclose(outputs.astype(jnp.float32), ref_out,
                        atol=1e-1, rtol=2e-2), "logits mismatch (resident)"
    assert jnp.allclose(loss, ref_loss, atol=2e-3, rtol=2e-3), \
        "loss mismatch (resident)"

    # Config 2: forced streaming path (2 x 4 grid) to exercise online softmax.
    loss2, outputs2 = cluster_memory_forward(bn_global_x, features, targets,
                                             tb=16, tn=128)
    jax.block_until_ready((loss2, outputs2))
    assert jnp.allclose(outputs2.astype(jnp.float32), ref_out,
                        atol=1e-1, rtol=2e-2), "logits mismatch (streaming)"
    assert jnp.allclose(loss2, ref_loss, atol=2e-3, rtol=2e-3), \
        "loss mismatch (streaming)"

    # TODO(synk): CM.backward's in-place momentum update of the cluster-memory
    # buffer is a training-time side effect, not part of the forward pass.
    print("KERNEL_OK")
</pallas_src>

<mosaic_0001>
module attributes {stable_mosaic.version = 11 : i64} {
  func.func @cluster_memory_kernel(%arg0: i32, %arg1: i32, %arg2: memref<32x128xbf16, #tpu.memory_space<vmem>>, %arg3: memref<512x128xbf16, #tpu.memory_space<vmem>>, %arg4: memref<32x1xi32, #tpu.memory_space<vmem>>, %arg5: memref<32x512xbf16, #tpu.memory_space<vmem>>, %arg6: memref<32x1xf32, #tpu.memory_space<vmem>>, %arg7: memref<32x128xbf16, #tpu.memory_space<vmem>>, %arg8: memref<32x1xf32, #tpu.memory_space<vmem>>, %arg9: memref<32x1xf32, #tpu.memory_space<vmem>>, %arg10: memref<32x1xf32, #tpu.memory_space<vmem>>) attributes {dimension_semantics = [#tpu.dimension_semantics<parallel>, #tpu.dimension_semantics<arbitrary>], iteration_bounds = array<i64: 1, 1>, scalar_prefetch = 0 : i64, scratch_operands = 4 : i64, tpu.core_type = #tpu.core_type<tc>, window_params = [{transform_indices = @transform_0, window_bounds = array<i64: 32, 128>}, {transform_indices = @transform_1, window_bounds = array<i64: 512, 128>}, {transform_indices = @transform_2, window_bounds = array<i64: 32, 1>}, {transform_indices = @transform_3, window_bounds = array<i64: 32, 512>}, {transform_indices = @transform_4, window_bounds = array<i64: 32, 1>}]} {
    %c0_i32 = arith.constant 0 : i32
    %0 = arith.cmpi eq, %arg1, %c0_i32 : i32
    %1 = arith.extui %0 : i1 to i32
    %c0_i32_0 = arith.constant 0 : i32
    %2 = arith.cmpi ne, %1, %c0_i32_0 : i32
    scf.if %2 {
      %c0_28 = arith.constant 0 : index
      %c0_29 = arith.constant 0 : index
      %42 = vector.load %arg2[%c0_28, %c0_29] : memref<32x128xbf16, #tpu.memory_space<vmem>>, vector<32x128xbf16>
      %43 = arith.extf %42 : vector<32x128xbf16> to vector<32x128xf32>
      %44 = arith.mulf %43, %43 : vector<32x128xf32>
      %cst_30 = arith.constant dense<0.000000e+00> : vector<32xf32>
      %45 = vector.multi_reduction <add>, %44, %cst_30 [1] : vector<32x128xf32> to vector<32xf32>
      %46 = vector.shape_cast %45 : vector<32xf32> to vector<32x1xf32>
      %cst_31 = arith.constant 1.000000e-24 : f32
      %47 = vector.broadcast %cst_31 : f32 to vector<32x1xf32>
      %48 = arith.maximumf %46, %47 : vector<32x1xf32>
      %49 = math.rsqrt %48 : vector<32x1xf32>
      %50 = vector.broadcast %49 : vector<32x1xf32> to vector<32x128xf32>
      %51 = arith.mulf %43, %50 : vector<32x128xf32>
      %cst_32 = arith.constant 2.000000e+01 : f32
      %52 = vector.broadcast %cst_32 : f32 to vector<32x128xf32>
      %53 = arith.mulf %51, %52 : vector<32x128xf32>
      %54 = arith.truncf %53 : vector<32x128xf32> to vector<32x128xbf16>
      %c0_33 = arith.constant 0 : index
      %c0_34 = arith.constant 0 : index
      %55 = vector.load %arg7[%c0_33, %c0_34] : memref<32x128xbf16, #tpu.memory_space<vmem>>, vector<32x128xbf16>
      tpu.vector_store %arg7[%c0_33, %c0_34], %54 {strides = array<i32>} : memref<32x128xbf16, #tpu.memory_space<vmem>>, vector<32x128xbf16>,
      %cst_35 = arith.constant 0xFF800000 : f32
      %56 = vector.broadcast %cst_35 : f32 to vector<32x1xf32>
      %c0_36 = arith.constant 0 : index
      %c0_37 = arith.constant 0 : index
      %57 = vector.load %arg8[%c0_36, %c0_37] : memref<32x1xf32, #tpu.memory_space<vmem>>, vector<32x1xf32>
      tpu.vector_store %arg8[%c0_36, %c0_37], %56 {strides = array<i32>} : memref<32x1xf32, #tpu.memory_space<vmem>>, vector<32x1xf32>,
      %cst_38 = arith.constant 0.000000e+00 : f32
      %58 = vector.broadcast %cst_38 : f32 to vector<32x1xf32>
      %c0_39 = arith.constant 0 : index
      %c0_40 = arith.constant 0 : index
      %59 = vector.load %arg9[%c0_39, %c0_40] : memref<32x1xf32, #tpu.memory_space<vmem>>, vector<32x1xf32>
      tpu.vector_store %arg9[%c0_39, %c0_40], %58 {strides = array<i32>} : memref<32x1xf32, #tpu.memory_space<vmem>>, vector<32x1xf32>,
      %cst_41 = arith.constant 0.000000e+00 : f32
      %60 = vector.broadcast %cst_41 : f32 to vector<32x1xf32>
      %c0_42 = arith.constant 0 : index
      %c0_43 = arith.constant 0 : index
      %61 = vector.load %arg10[%c0_42, %c0_43] : memref<32x1xf32, #tpu.memory_space<vmem>>, vector<32x1xf32>
      tpu.vector_store %arg10[%c0_42, %c0_43], %60 {strides = array<i32>} : memref<32x1xf32, #tpu.memory_space<vmem>>, vector<32x1xf32>,
    } else {
    }
    %c0 = arith.constant 0 : index
    %c0_1 = arith.constant 0 : index
    %3 = vector.load %arg7[%c0, %c0_1] : memref<32x128xbf16, #tpu.memory_space<vmem>>, vector<32x128xbf16>
    %c0_2 = arith.constant 0 : index
    %c0_3 = arith.constant 0 : index
    %4 = vector.load %arg3[%c0_2, %c0_3] : memref<512x128xbf16, #tpu.memory_space<vmem>>, vector<512x128xbf16>
    %cst = arith.constant dense<0.000000e+00> : vector<32x512xf32>
    %5 = tpu.matmul %3, %4, %cst {dimension_numbers = #tpu.dot_dimension_numbers<[1], [1], [0], [0], [0, 0, 1, 0], [], []>} : vector<32x128xbf16>, vector<512x128xbf16>, vector<32x512xf32> -> vector<32x512xf32>
    %6 = arith.truncf %5 : vector<32x512xf32> to vector<32x512xbf16>
    %c0_4 = arith.constant 0 : index
    %c0_5 = arith.constant 0 : index
    %7 = vector.load %arg5[%c0_4, %c0_5] : memref<32x512xbf16, #tpu.memory_space<vmem>>, vector<32x512xbf16>
    tpu.vector_store %arg5[%c0_4, %c0_5], %6 {strides = array<i32>} : memref<32x512xbf16, #tpu.memory_space<vmem>>, vector<32x512xbf16>,
    %cst_6 = arith.constant dense<0xFF800000> : vector<32xf32>
    %8 = vector.multi_reduction <maximumf>, %5, %cst_6 [1] : vector<32x512xf32> to vector<32xf32>
    %9 = vector.shape_cast %8 : vector<32xf32> to vector<32x1xf32>
    %c0_7 = arith.constant 0 : index
    %c0_8 = arith.constant 0 : index
    %10 = vector.load %arg8[%c0_7, %c0_8] : memref<32x1xf32, #tpu.memory_space<vmem>>, vector<32x1xf32>
    %11 = arith.maximumf %10, %9 : vector<32x1xf32>
    %c0_9 = arith.constant 0 : index
    %c0_10 = arith.constant 0 : index
    %12 = vector.load %arg9[%c0_9, %c0_10] : memref<32x1xf32, #tpu.memory_space<vmem>>, vector<32x1xf32>
    %c0_11 = arith.constant 0 : index
    %c0_12 = arith.constant 0 : index
    %13 = vector.load %arg8[%c0_11, %c0_12] : memref<32x1xf32, #tpu.memory_space<vmem>>, vector<32x1xf32>
    %14 = arith.subf %13, %11 : vector<32x1xf32>
    %15 = math.exp %14 : vector<32x1xf32>
    %16 = arith.mulf %12, %15 : vector<32x1xf32>
    %17 = vector.broadcast %11 : vector<32x1xf32> to vector<32x512xf32>
    %18 = arith.subf %5, %17 : vector<32x512xf32>
    %19 = math.exp %18 : vector<32x512xf32>
    %cst_13 = arith.constant dense<0.000000e+00> : vector<32xf32>
    %20 = vector.multi_reduction <add>, %19, %cst_13 [1] : vector<32x512xf32> to vector<32xf32>
    %21 = vector.shape_cast %20 : vector<32xf32> to vector<32x1xf32>
    %22 = arith.addf %16, %21 : vector<32x1xf32>
    %c0_14 = arith.constant 0 : index
    %c0_15 = arith.constant 0 : index
    %23 = vector.load %arg9[%c0_14, %c0_15] : memref<32x1xf32, #tpu.memory_space<vmem>>, vector<32x1xf32>
    tpu.vector_store %arg9[%c0_14, %c0_15], %22 {strides = array<i32>} : memref<32x1xf32, #tpu.memory_space<vmem>>, vector<32x1xf32>,
    %c0_16 = arith.constant 0 : index
    %c0_17 = arith.constant 0 : index
    %24 = vector.load %arg8[%c0_16, %c0_17] : memref<32x1xf32, #tpu.memory_space<vmem>>, vector<32x1xf32>
    tpu.vector_store %arg8[%c0_16, %c0_17], %11 {strides = array<i32>} : memref<32x1xf32, #tpu.memory_space<vmem>>, vector<32x1xf32>,
    %25 = tpu.iota {dimensions = array<i32: 1>} : vector<32x512xi32>
    %c512_i32 = arith.constant 512 : i32
    %26 = arith.muli %arg1, %c512_i32 : i32
    %27 = vector.broadcast %26 : i32 to vector<32x512xi32>
    %28 = arith.addi %25, %27 : vector<32x512xi32>
    %c0_18 = arith.constant 0 : index
    %c0_19 = arith.constant 0 : index
    %29 = vector.load %arg4[%c0_18, %c0_19] : memref<32x1xi32, #tpu.memory_space<vmem>>, vector<32x1xi32>
    %30 = vector.broadcast %29 : vector<32x1xi32> to vector<32x512xi32>
    %31 = arith.cmpi eq, %28, %30 : vector<32x512xi32>
    %c0_20 = arith.constant 0 : index
    %c0_21 = arith.constant 0 : index
    %32 = vector.load %arg10[%c0_20, %c0_21] : memref<32x1xf32, #tpu.memory_space<vmem>>, vector<32x1xf32>
    %cst_22 = arith.constant 0.000000e+00 : f32
    %33 = vector.broadcast %cst_22 : f32 to vector<32x512xf32>
    %34 = arith.select %31, %5, %33 : vector<32x512xi1>, vector<32x512xf32>
    %cst_23 = arith.constant dense<0.000000e+00> : vector<32xf32>
    %35 = vector.multi_reduction <add>, %34, %cst_23 [1] : vector<32x512xf32> to vector<32xf32>
    %36 = vector.shape_cast %35 : vector<32xf32> to vector<32x1xf32>
    %37 = arith.addf %32, %36 : vector<32x1xf32>
    %c0_24 = arith.constant 0 : index
    %c0_25 = arith.constant 0 : index
    %38 = vector.load %arg10[%c0_24, %c0_25] : memref<32x1xf32, #tpu.memory_space<vmem>>, vector<32x1xf32>
    tpu.vector_store %arg10[%c0_24, %c0_25], %37 {strides = array<i32>} : memref<32x1xf32, #tpu.memory_space<vmem>>, vector<32x1xf32>,
    %c0_i32_26 = arith.constant 0 : i32
    %39 = arith.cmpi eq, %arg1, %c0_i32_26 : i32
    %40 = arith.extui %39 : i1 to i32
    %c0_i32_27 = arith.constant 0 : i32
    %41 = arith.cmpi ne, %40, %c0_i32_27 : i32
    scf.if %41 {
      %c0_28 = arith.constant 0 : index
      %c0_29 = arith.constant 0 : index
      %42 = vector.load %arg8[%c0_28, %c0_29] : memref<32x1xf32, #tpu.memory_space<vmem>>, vector<32x1xf32>
      %c0_30 = arith.constant 0 : index
      %c0_31 = arith.constant 0 : index
      %43 = vector.load %arg9[%c0_30, %c0_31] : memref<32x1xf32, #tpu.memory_space<vmem>>, vector<32x1xf32>
      %44 = math.log %43 : vector<32x1xf32>
      %45 = arith.addf %42, %44 : vector<32x1xf32>
      %c0_32 = arith.constant 0 : index
      %c0_33 = arith.constant 0 : index
      %46 = vector.load %arg10[%c0_32, %c0_33] : memref<32x1xf32, #tpu.memory_space<vmem>>, vector<32x1xf32>
      %47 = arith.subf %45, %46 : vector<32x1xf32>
      %c0_34 = arith.constant 0 : index
      %c0_35 = arith.constant 0 : index
      %48 = vector.load %arg6[%c0_34, %c0_35] : memref<32x1xf32, #tpu.memory_space<vmem>>, vector<32x1xf32>
      tpu.vector_store %arg6[%c0_34, %c0_35], %47 {strides = array<i32>} : memref<32x1xf32, #tpu.memory_space<vmem>>, vector<32x1xf32>,
    } else {
    }
    return
  }
  func.func @transform_0(%arg0: i32, %arg1: i32) -> (i32, i32) {
    %c0_i32 = arith.constant 0 : i32
    %c0_i32_0 = arith.constant 0 : i32
    return %arg0, %c0_i32 : i32, i32
  }
  func.func @transform_1(%arg0: i32, %arg1: i32) -> (i32, i32) {
    %c0_i32 = arith.constant 0 : i32
    %c0_i32_0 = arith.constant 0 : i32
    return %arg1, %c0_i32 : i32, i32
  }
  func.func @transform_2(%arg0: i32, %arg1: i32) -> (i32, i32) {
    %c0_i32 = arith.constant 0 : i32
    %c0_i32_0 = arith.constant 0 : i32
    return %arg0, %c0_i32 : i32, i32
  }
  func.func @transform_3(%arg0: i32, %arg1: i32) -> (i32, i32) {
    %c0_i32 = arith.constant 0 : i32
    return %arg0, %arg1 : i32, i32
  }
  func.func @transform_4(%arg0: i32, %arg1: i32) -> (i32, i32) {
    %c0_i32 = arith.constant 0 : i32
    %c0_i32_0 = arith.constant 0 : i32
    return %arg0, %c0_i32 : i32, i32
  }
}

</mosaic_0001>

<llo_original>
// kernel: cluster_memory_forward.1
$region0: #{cluster_memory_forward.1}
  #allocation0 [shape = 'u32[]', space=smem, size = 0x4, offset = 0x4, fixed_abs, tag = 'smem constant byte address 0x4 - core index']
  #allocation1 [shape = 'u32[72,128]{1,0:T(1,128)}', space=vmem, size = 0x9000, scoped, tag = 'internal scratch']
  #allocation2 [shape = 'bf16[32,128]{1,0:T(8,128)(2,1)}', space=vmem, size = 0x2000, scoped, tag = 'scratch operand']
  #allocation3 [shape = 'f32[32,1]{1,0:T(8,128)}', space=vmem, size = 0x4000, scoped, tag = 'scratch operand']
  #allocation4 [shape = 'f32[32,1]{1,0:T(8,128)}', space=vmem, size = 0x4000, scoped, tag = 'scratch operand']
  #allocation5 [shape = 'f32[32,1]{1,0:T(8,128)}', space=vmem, size = 0x4000, scoped, tag = 'scratch operand']
  %s0 = inlined_call_operand.vmem [shape: bf16[32,128], index: 0, kind: input, shape index: {}]
  %s1 = inlined_call_operand.vmem [shape: bf16[512,128], index: 1, kind: input, shape index: {}]
  %s2 = inlined_call_operand.vmem [shape: s32[32,1], index: 2, kind: input, shape index: {}]
  %s3 = inlined_call_operand.hbm [shape: bf16[32,512], index: 3, kind: output, shape index: {0}]
  %s4 = inlined_call_operand.vmem [shape: f32[32,1], index: 4, kind: output, shape index: {1}]
  %5 = xla_tuple %s3, %s4
  %s6 = sld [smem:[#allocation0]]
  $region38: #{cluster_memory_forward.1} parent=0
    _
  %s8 = ssub.s32 1, %s6
  %s9 = scalar_select 0, %s8, %s6
  $region1: #{cluster_memory_forward.1} parent=0
    #allocation6 [shape = 'u8[32768]{0}', space=vmem, size = 0x8000, scoped, tag = 'output window, operand 0, single buffered']
    #allocation7 [shape = 's32[1]{0}', space=sflag, size = 0x4, scoped, tag = 'scoped memory for cluster_memory_forward.1']
    %10 = vsyncpa [#allocation7], 0
    // Predicated region
    $region2: #{cluster_memory_forward.1} parent=1 // pred_check
      _
    $region3: #{cluster_memory_forward.1} parent=1 // pred_check_branch
      %12 = sbr.rel (0) target = $region5
    $region4: #{cluster_memory_forward.1} parent=1 // pred_region
      _
    $region5: #{cluster_memory_forward.1} parent=1 // pred_fallthru
      _
    // Predicated region
    $region6: #{cluster_memory_forward.1} parent=1 // pred_check
      _
    $region7: #{cluster_memory_forward.1} parent=1 // pred_check_branch
      %14 = sbr.rel (0) target = $region9
    $region8: #{cluster_memory_forward.1} parent=1 // pred_region
      _
    $region9: #{cluster_memory_forward.1} parent=1 // pred_fallthru
      _
    // Predicated region
    $region10: #{cluster_memory_forward.1} parent=1 // pred_check
      _
    $region11: #{cluster_memory_forward.1} parent=1 // pred_check_branch
      %16 = sbr.rel (0) target = $region13
    $region12: #{cluster_memory_forward.1} parent=1 // pred_region
      _
    $region13: #{cluster_memory_forward.1} parent=1 // pred_fallthru
      _
    %p17 = scmp.eq.s32.totalorder 0, 0
    // Predicated region
    $region14: #{cluster_memory_forward.1} parent=1 // pred_check
      %p18 = pneg %p17
    $region15: #{cluster_memory_forward.1} parent=1 // pred_check_branch
      %20 = sbr.rel (%p18) target = $region17
    $region16: #{cluster_memory_forward.1} parent=1 // pred_region
      %v21 = vld [vmem:[%s0] sm:$0xf]
      %v22 = vld [vmem:[%s0 + $0x4] sm:$0xf]
      %v23 = vld [vmem:[%s0 + $0x8] sm:$0xf]
      %v24 = vld [vmem:[%s0 + $0xc] sm:$0xf]
      %v25 = vunpack.c.l.bf16 %v21
      %v26 = vunpack.c.l.bf16 %v22
      %v27 = vunpack.c.l.bf16 %v23
      %v28 = vunpack.c.l.bf16 %v24
      %v29 = vmul.f32 %v25, %v25
      %v30 = vmul.f32 %v26, %v26
      %v31 = vmul.f32 %v27, %v27
      %v32 = vmul.f32 %v28, %v28
      %33 = vadd.xlane.f32.xlu0 %v29
      %v34 = vpop.xlane.xlu0 %33
      %35 = vadd.xlane.f32.xlu0 %v30
      %v36 = vpop.xlane.xlu0 %35
      %37 = vadd.xlane.f32.xlu0 %v31
      %v38 = vpop.xlane.xlu0 %37
      %39 = vadd.xlane.f32.xlu0 %v32
      %v40 = vpop.xlane.xlu0 %39
      %v41 = vmax.f32 %v34, 1e-24
      %v42 = vmax.f32 %v36, 1e-24
      %v43 = vmax.f32 %v38, 1e-24
      %v44 = vmax.f32 %v40, 1e-24
      %v45 = vrsqrt.pop %v41
      %v46 = vmul.f32 %v45, %v41
      %v47 = vmul.f32 %v46, %v45
      %v48 = vmul.f32 0.5, %v47
      %v49 = vsub.f32 1.5, %v48
      %v50 = vmul.f32 %v45, %v49
      %vm51 = vweird.f32 %v41
      %vm52 = vweird.f32 %v45
      %vm53 = vmor %vm51, %vm52
      %v54 = vsel %vm53, %v45, %v50
      %v55 = vrsqrt.pop %v42
      %v56 = vmul.f32 %v55, %v42
      %v57 = vmul.f32 %v56, %v55
      %v58 = vmul.f32 0.5, %v57
      %v59 = vsub.f32 1.5, %v58
      %v60 = vmul.f32 %v55, %v59
      %vm61 = vweird.f32 %v42
      %vm62 = vweird.f32 %v55
      %vm63 = vmor %vm61, %vm62
      %v64 = vsel %vm63, %v55, %v60
      %v65 = vrsqrt.pop %v43
      %v66 = vmul.f32 %v65, %v43
      %v67 = vmul.f32 %v66, %v65
      %v68 = vmul.f32 0.5, %v67
      %v69 = vsub.f32 1.5, %v68
      %v70 = vmul.f32 %v65, %v69
      %vm71 = vweird.f32 %v43
      %vm72 = vweird.f32 %v65
      %vm73 = vmor %vm71, %vm72
      %v74 = vsel %vm73, %v65, %v70
      %v75 = vrsqrt.pop %v44
      %v76 = vmul.f32 %v75, %v44
      %v77 = vmul.f32 %v76, %v75
      %v78 = vmul.f32 0.5, %v77
      %v79 = vsub.f32 1.5, %v78
      %v80 = vmul.f32 %v75, %v79
      %vm81 = vweird.f32 %v44
      %vm82 = vweird.f32 %v75
      %vm83 = vmor %vm81, %vm82
      %v84 = vsel %vm83, %v75, %v80
      %v85 = vmul.f32 %v25, %v54
      %v86 = vmul.f32 %v26, %v64
      %v87 = vmul.f32 %v27, %v74
      %v88 = vmul.f32 %v28, %v84
      %v89 = vmul.f32 %v85, 20.0
      %v90 = vmul.f32 %v86, 20.0
      %v91 = vmul.f32 %v87, 20.0
      %v92 = vmul.f32 %v88, 20.0
      %v93 = vpack.c.bf16 %v89, %v89
      %v94 = vpack.c.bf16 %v90, %v90
      %v95 = vpack.c.bf16 %v91, %v91
      %v96 = vpack.c.bf16 %v92, %v92
      %97 = vst [vmem:[#allocation2] sm:$0xf] %v93
      %98 = vst [vmem:[#allocation2 + $0x4] sm:$0xf] %v94
      %99 = vst [vmem:[#allocation2 + $0x8] sm:$0xf] %v95
      %100 = vst [vmem:[#allocation2 + $0xc] sm:$0xf] %v96
      %vm101 = vcmask 7168
      %102 = vst.msk [vmem:[#allocation3] sm:$0xff] %vm101, -inf
      %103 = vst.msk [vmem:[#allocation3 + $0x8] sm:$0xff] %vm101, -inf
      %104 = vst.msk [vmem:[#allocation3 + $0x10] sm:$0xff] %vm101, -inf
      %105 = vst.msk [vmem:[#allocation3 + $0x18] sm:$0xff] %vm101, -inf
      %106 = vst.msk [vmem:[#allocation4] sm:$0xff] %vm101, 0.0
      %107 = vst.msk [vmem:[#allocation4 + $0x8] sm:$0xff] %vm101, 0.0
      %108 = vst.msk [vmem:[#allocation4 + $0x10] sm:$0xff] %vm101, 0.0
      %109 = vst.msk [vmem:[#allocation4 + $0x18] sm:$0xff] %vm101, 0.0
      %110 = vst.msk [vmem:[#allocation5] sm:$0xff] %vm101, 0.0
      %111 = vst.msk [vmem:[#allocation5 + $0x8] sm:$0xff] %vm101, 0.0
      %112 = vst.msk [vmem:[#allocation5 + $0x10] sm:$0xff] %vm101, 0.0
      %113 = vst.msk [vmem:[#allocation5 + $0x18] sm:$0xff] %vm101, 0.0
    $region17: #{cluster_memory_forward.1} parent=1 // pred_fallthru
      _
    %v114 = vld [vmem:[#allocation2] sm:$0xf]
    %v115 = vld [vmem:[#allocation2 + $0x4] sm:$0xf]
    %v116 = vld [vmem:[#allocation2 + $0x8] sm:$0xf]
    %v117 = vld [vmem:[#allocation2 + $0xc] sm:$0xf]
    %v118 = vld [vmem:[%s1] sm:$0xf]
    %v119 = vld [vmem:[%s1 + $0x4] sm:$0xf]
    %v120 = vld [vmem:[%s1 + $0x8] sm:$0xf]
    %v121 = vld [vmem:[%s1 + $0xc] sm:$0xf]
    %v122 = vld [vmem:[%s1 + $0x10] sm:$0xf]
    %v123 = vld [vmem:[%s1 + $0x14] sm:$0xf]
    %v124 = vld [vmem:[%s1 + $0x18] sm:$0xf]
    %v125 = vld [vmem:[%s1 + $0x1c] sm:$0xf]
    %v126 = vld [vmem:[%s1 + $0x20] sm:$0xf]
    %v127 = vld [vmem:[%s1 + $0x24] sm:$0xf]
    %v128 = vld [vmem:[%s1 + $0x28] sm:$0xf]
    %v129 = vld [vmem:[%s1 + $0x2c] sm:$0xf]
    %v130 = vld [vmem:[%s1 + $0x30] sm:$0xf]
    %v131 = vld [vmem:[%s1 + $0x34] sm:$0xf]
    %v132 = vld [vmem:[%s1 + $0x38] sm:$0xf]
    %v133 = vld [vmem:[%s1 + $0x3c] sm:$0xf]
    %v134 = vld [vmem:[%s1 + $0x40] sm:$0xf]
    %v135 = vld [vmem:[%s1 + $0x44] sm:$0xf]
    %v136 = vld [vmem:[%s1 + $0x48] sm:$0xf]
    %v137 = vld [vmem:[%s1 + $0x4c] sm:$0xf]
    %v138 = vld [vmem:[%s1 + $0x50] sm:$0xf]
    %v139 = vld [vmem:[%s1 + $0x54] sm:$0xf]
    %v140 = vld [vmem:[%s1 + $0x58] sm:$0xf]
    %v141 = vld [vmem:[%s1 + $0x5c] sm:$0xf]
    %v142 = vld [vmem:[%s1 + $0x60] sm:$0xf]
    %v143 = vld [vmem:[%s1 + $0x64] sm:$0xf]
    %v144 = vld [vmem:[%s1 + $0x68] sm:$0xf]
    %v145 = vld [vmem:[%s1 + $0x6c] sm:$0xf]
    %v146 = vld [vmem:[%s1 + $0x70] sm:$0xf]
    %v147 = vld [vmem:[%s1 + $0x74] sm:$0xf]
    %v148 = vld [vmem:[%s1 + $0x78] sm:$0xf]
    %v149 = vld [vmem:[%s1 + $0x7c] sm:$0xf]
    %v150 = vld [vmem:[%s1 + $0x80] sm:$0xf]
    %v151 = vld [vmem:[%s1 + $0x84] sm:$0xf]
    %v152 = vld [vmem:[%s1 + $0x88] sm:$0xf]
    %v153 = vld [vmem:[%s1 + $0x8c] sm:$0xf]
    %v154 = vld [vmem:[%s1 + $0x90] sm:$0xf]
    %v155 = vld [vmem:[%s1 + $0x94] sm:$0xf]
    %v156 = vld [vmem:[%s1 + $0x98] sm:$0xf]
    %v157 = vld [vmem:[%s1 + $0x9c] sm:$0xf]
    %v158 = vld [vmem:[%s1 + $0xa0] sm:$0xf]
    %v159 = vld [vmem:[%s1 + $0xa4] sm:$0xf]
    %v160 = vld [vmem:[%s1 + $0xa8] sm:$0xf]
    %v161 = vld [vmem:[%s1 + $0xac] sm:$0xf]
    %v162 = vld [vmem:[%s1 + $0xb0] sm:$0xf]
    %v163 = vld [vmem:[%s1 + $0xb4] sm:$0xf]
    %v164 = vld [vmem:[%s1 + $0xb8] sm:$0xf]
    %v165 = vld [vmem:[%s1 + $0xbc] sm:$0xf]
    %v166 = vld [vmem:[%s1 + $0xc0] sm:$0xf]
    %v167 = vld [vmem:[%s1 + $0xc4] sm:$0xf]
    %v168 = vld [vmem:[%s1 + $0xc8] sm:$0xf]
    %v169 = vld [vmem:[%s1 + $0xcc] sm:$0xf]
    %v170 = vld [vmem:[%s1 + $0xd0] sm:$0xf]
    %v171 = vld [vmem:[%s1 + $0xd4] sm:$0xf]
    %v172 = vld [vmem:[%s1 + $0xd8] sm:$0xf]
    %v173 = vld [vmem:[%s1 + $0xdc] sm:$0xf]
    %v174 = vld [vmem:[%s1 + $0xe0] sm:$0xf]
    %v175 = vld [vmem:[%s1 + $0xe4] sm:$0xf]
    %v176 = vld [vmem:[%s1 + $0xe8] sm:$0xf]
    %v177 = vld [vmem:[%s1 + $0xec] sm:$0xf]
    %v178 = vld [vmem:[%s1 + $0xf0] sm:$0xf]
    %v179 = vld [vmem:[%s1 + $0xf4] sm:$0xf]
    %v180 = vld [vmem:[%s1 + $0xf8] sm:$0xf]
    %v181 = vld [vmem:[%s1 + $0xfc] sm:$0xf]
    %v186 = vunpack.c.l.b16 %v114
    %v187 = vunpack.c.l.b16 %v115
    %v188 = vunpack.c.l.b16 %v116
    %v189 = vunpack.c.l.b16 %v117
    %v190 = vpack.c.b16 %v187, %v186
    %v191 = vpack.c.b16 %v189, %v188
    %v258 = vunpack.c.l.b16 %v118
    %v259 = vunpack.c.l.b16 %v119
    %v260 = vunpack.c.l.b16 %v120
    %v261 = vunpack.c.l.b16 %v121
    %v262 = vunpack.c.l.b16 %v122
    %v263 = vunpack.c.l.b16 %v123
    %v264 = vunpack.c.l.b16 %v124
    %v265 = vunpack.c.l.b16 %v125
    %v266 = vunpack.c.l.b16 %v126
    %v267 = vunpack.c.l.b16 %v127
    %v268 = vunpack.c.l.b16 %v128
    %v269 = vunpack.c.l.b16 %v129
    %v270 = vunpack.c.l.b16 %v130
    %v271 = vunpack.c.l.b16 %v131
    %v272 = vunpack.c.l.b16 %v132
    %v273 = vunpack.c.l.b16 %v133
    %v274 = vunpack.c.l.b16 %v134
    %v275 = vunpack.c.l.b16 %v135
    %v276 = vunpack.c.l.b16 %v136
    %v277 = vunpack.c.l.b16 %v137
    %v278 = vunpack.c.l.b16 %v138
    %v279 = vunpack.c.l.b16 %v139
    %v280 = vunpack.c.l.b16 %v140
    %v281 = vunpack.c.l.b16 %v141
    %v282 = vunpack.c.l.b16 %v142
    %v283 = vunpack.c.l.b16 %v143
    %v284 = vunpack.c.l.b16 %v144
    %v285 = vunpack.c.l.b16 %v145
    %v286 = vunpack.c.l.b16 %v146
    %v287 = vunpack.c.l.b16 %v147
    %v288 = vunpack.c.l.b16 %v148
    %v289 = vunpack.c.l.b16 %v149
    %v290 = vunpack.c.l.b16 %v150
    %v291 = vunpack.c.l.b16 %v151
    %v292 = vunpack.c.l.b16 %v152
    %v293 = vunpack.c.l.b16 %v153
    %v294 = vunpack.c.l.b16 %v154
    %v295 = vunpack.c.l.b16 %v155
    %v296 = vunpack.c.l.b16 %v156
    %v297 = vunpack.c.l.b16 %v157
    %v298 = vunpack.c.l.b16 %v158
    %v299 = vunpack.c.l.b16 %v159
    %v300 = vunpack.c.l.b16 %v160
    %v301 = vunpack.c.l.b16 %v161
    %v302 = vunpack.c.l.b16 %v162
    %v303 = vunpack.c.l.b16 %v163
    %v304 = vunpack.c.l.b16 %v164
    %v305 = vunpack.c.l.b16 %v165
    %v306 = vunpack.c.l.b16 %v166
    %v307 = vunpack.c.l.b16 %v167
    %v308 = vunpack.c.l.b16 %v168
    %v309 = vunpack.c.l.b16 %v169
    %v310 = vunpack.c.l.b16 %v170
    %v311 = vunpack.c.l.b16 %v171
    %v312 = vunpack.c.l.b16 %v172
    %v313 = vunpack.c.l.b16 %v173
    %v314 = vunpack.c.l.b16 %v174
    %v315 = vunpack.c.l.b16 %v175
    %v316 = vunpack.c.l.b16 %v176
    %v317 = vunpack.c.l.b16 %v177
    %v318 = vunpack.c.l.b16 %v178
    %v319 = vunpack.c.l.b16 %v179
    %v320 = vunpack.c.l.b16 %v180
    %v321 = vunpack.c.l.b16 %v181
    %v322 = vpack.c.b16 %v259, %v258
    %v323 = vpack.c.b16 %v261, %v260
    %v324 = vpack.c.b16 %v263, %v262
    %v325 = vpack.c.b16 %v265, %v264
    %v326 = vpack.c.b16 %v267, %v266
    %v327 = vpack.c.b16 %v269, %v268
    %v328 = vpack.c.b16 %v271, %v270
    %v329 = vpack.c.b16 %v273, %v272
    %v330 = vpack.c.b16 %v275, %v274
    %v331 = vpack.c.b16 %v277, %v276
    %v332 = vpack.c.b16 %v279, %v278
    %v333 = vpack.c.b16 %v281, %v280
    %v334 = vpack.c.b16 %v283, %v282
    %v335 = vpack.c.b16 %v285, %v284
    %v336 = vpack.c.b16 %v287, %v286
    %v337 = vpack.c.b16 %v289, %v288
    %v338 = vpack.c.b16 %v291, %v290
    %v339 = vpack.c.b16 %v293, %v292
    %v340 = vpack.c.b16 %v295, %v294
    %v341 = vpack.c.b16 %v297, %v296
    %v342 = vpack.c.b16 %v299, %v298
    %v343 = vpack.c.b16 %v301, %v300
    %v344 = vpack.c.b16 %v303, %v302
    %v345 = vpack.c.b16 %v305, %v304
    %v346 = vpack.c.b16 %v307, %v306
    %v347 = vpack.c.b16 %v309, %v308
    %v348 = vpack.c.b16 %v311, %v310
    %v349 = vpack.c.b16 %v313, %v312
    %v350 = vpack.c.b16 %v315, %v314
    %v351 = vpack.c.b16 %v317, %v316
    %v352 = vpack.c.b16 %v319, %v318
    %v353 = vpack.c.b16 %v321, %v320
    %386 = vmatpush.bf16.xpose.msra.mxu0 %v329
    %387 = vmatpush.bf16.xpose.msra.mxu0 %v328
    %388 = vmatpush.bf16.xpose.msra.mxu0 %v327
    %389 = vmatpush.bf16.xpose.msra.mxu0 %v326
    %390 = vmatpush.bf16.xpose.msra.mxu0 %v325
    %391 = vmatpush.bf16.xpose.msra.mxu0 %v324
    %392 = vmatpush.bf16.xpose.msra.mxu0 %v323
    %393 = vmatpush.bf16.xpose.msra.mxu0 %v322
    %394 = vmatmul.bf16.gmra.mxu0 %v190
    %v395 = vpop.f32.mrf.mxu0
    %v396 = vadd.f32 0.0, %v395
    %v397 = vpop.f32.mrf.mxu0
    %v398 = vadd.f32 0.0, %v397
    %399 = vmatmul.bf16.gmra.mxu0 %v191
    %v400 = vpop.f32.mrf.mxu0
    %v401 = vadd.f32 0.0, %v400
    %v402 = vpop.f32.mrf.mxu0
    %v403 = vadd.f32 0.0, %v402
    %404 = vdwg.mxu0
    %405 = vmatpush.bf16.xpose.msra.mxu0 %v337
    %406 = vmatpush.bf16.xpose.msra.mxu0 %v336
    %407 = vmatpush.bf16.xpose.msra.mxu0 %v335
    %408 = vmatpush.bf16.xpose.msra.mxu0 %v334
    %409 = vmatpush.bf16.xpose.msra.mxu0 %v333
    %410 = vmatpush.bf16.xpose.msra.mxu0 %v332
    %411 = vmatpush.bf16.xpose.msra.mxu0 %v331
    %412 = vmatpush.bf16.xpose.msra.mxu0 %v330
    %413 = vmatmul.bf16.gmra.mxu0 %v190
    %v414 = vpop.f32.mrf.mxu0
    %v415 = vadd.f32 0.0, %v414
    %v416 = vpop.f32.mrf.mxu0
    %v417 = vadd.f32 0.0, %v416
    %418 = vmatmul.bf16.gmra.mxu0 %v191
    %v419 = vpop.f32.mrf.mxu0
    %v420 = vadd.f32 0.0, %v419
    %v421 = vpop.f32.mrf.mxu0
    %v422 = vadd.f32 0.0, %v421
    %423 = vdwg.mxu0
    %424 = vmatpush.bf16.xpose.msra.mxu0 %v345
    %425 = vmatpush.bf16.xpose.msra.mxu0 %v344
    %426 = vmatpush.bf16.xpose.msra.mxu0 %v343
    %427 = vmatpush.bf16.xpose.msra.mxu0 %v342
    %428 = vmatpush.bf16.xpose.msra.mxu0 %v341
    %429 = vmatpush.bf16.xpose.msra.mxu0 %v340
    %430 = vmatpush.bf16.xpose.msra.mxu0 %v339
    %431 = vmatpush.bf16.xpose.msra.mxu0 %v338
    %432 = vmatmul.bf16.gmra.mxu0 %v190
    %v433 = vpop.f32.mrf.mxu0
    %v434 = vadd.f32 0.0, %v433
    %v435 = vpop.f32.mrf.mxu0
    %v436 = vadd.f32 0.0, %v435
    %437 = vmatmul.bf16.gmra.mxu0 %v191
    %v438 = vpop.f32.mrf.mxu0
    %v439 = vadd.f32 0.0, %v438
    %v440 = vpop.f32.mrf.mxu0
    %v441 = vadd.f32 0.0, %v440
    %442 = vdwg.mxu0
    %443 = vmatpush.bf16.xpose.msra.mxu0 %v353
    %444 = vmatpush.bf16.xpose.msra.mxu0 %v352
    %445 = vmatpush.bf16.xpose.msra.mxu0 %v351
    %446 = vmatpush.bf16.xpose.msra.mxu0 %v350
    %447 = vmatpush.bf16.xpose.msra.mxu0 %v349
    %448 = vmatpush.bf16.xpose.msra.mxu0 %v348
    %449 = vmatpush.bf16.xpose.msra.mxu0 %v347
    %450 = vmatpush.bf16.xpose.msra.mxu0 %v346
    %451 = vmatmul.bf16.gmra.mxu0 %v190
    %v452 = vpop.f32.mrf.mxu0
    %v453 = vadd.f32 0.0, %v452
    %v454 = vpop.f32.mrf.mxu0
    %v455 = vadd.f32 0.0, %v454
    %456 = vmatmul.bf16.gmra.mxu0 %v191
    %v457 = vpop.f32.mrf.mxu0
    %v458 = vadd.f32 0.0, %v457
    %v459 = vpop.f32.mrf.mxu0
    %v460 = vadd.f32 0.0, %v459
    %461 = vdwg.mxu0
    %v462 = vpack.c.bf16 %v415, %v396
    %v463 = vpack.c.bf16 %v453, %v434
    %v464 = vpack.c.bf16 %v417, %v398
    %v465 = vpack.c.bf16 %v455, %v436
    %v466 = vpack.c.bf16 %v420, %v401
    %v467 = vpack.c.bf16 %v458, %v439
    %v468 = vpack.c.bf16 %v422, %v403
    %v469 = vpack.c.bf16 %v460, %v441
    %470 = vst [vmem:[#allocation6] sm:$0xff] %v462
    %471 = vst [vmem:[#allocation6 + $0x8] sm:$0xff] %v463
    %472 = vst [vmem:[#allocation6 + $0x10] sm:$0xff] %v464
    %473 = vst [vmem:[#allocation6 + $0x18] sm:$0xff] %v465
    %474 = vst [vmem:[#allocation6 + $0x20] sm:$0xff] %v466
    %475 = vst [vmem:[#allocation6 + $0x28] sm:$0xff] %v467
    %476 = vst [vmem:[#allocation6 + $0x30] sm:$0xff] %v468
    %477 = vst [vmem:[#allocation6 + $0x38] sm:$0xff] %v469
    %v478 = vmax.f32 %v396, %v415
    %v479 = vmax.f32 %v478, %v434
    %v480 = vmax.f32 %v479, %v453
    %481 = vmax.xlane.f32.xlu0 %v480
    %v482 = vpop.xlane.xlu0 %481
    %v483 = vmax.f32 %v398, %v417
    %v484 = vmax.f32 %v483, %v436
    %v485 = vmax.f32 %v484, %v455
    %486 = vmax.xlane.f32.xlu0 %v485
    %v487 = vpop.xlane.xlu0 %486
    %v488 = vmax.f32 %v401, %v420
    %v489 = vmax.f32 %v488, %v439
    %v490 = vmax.f32 %v489, %v458
    %491 = vmax.xlane.f32.xlu0 %v490
    %v492 = vpop.xlane.xlu0 %491
    %v493 = vmax.f32 %v403, %v422
    %v494 = vmax.f32 %v493, %v441
    %v495 = vmax.f32 %v494, %v460
    %496 = vmax.xlane.f32.xlu0 %v495
    %v497 = vpop.xlane.xlu0 %496
    %v498 = vld [vmem:[#allocation3] sm:$0xff]
    %v499 = vld [vmem:[#allocation3 + $0x8] sm:$0xff]
    %v500 = vld [vmem:[#allocation3 + $0x10] sm:$0xff]
    %v501 = vld [vmem:[#allocation3 + $0x18] sm:$0xff]
    %v502 = vmax.f32 %v498, %v482
    %v503 = vmax.f32 %v499, %v487
    %v504 = vmax.f32 %v500, %v492
    %v505 = vmax.f32 %v501, %v497
    %v506 = vld [vmem:[#allocation4] sm:$0xff]
    %v507 = vld [vmem:[#allocation4 + $0x8] sm:$0xff]
    %v508 = vld [vmem:[#allocation4 + $0x10] sm:$0xff]
    %v509 = vld [vmem:[#allocation4 + $0x18] sm:$0xff]
    %v510 = vsub.f32 %v498, %v502
    %v511 = vsub.f32 %v499, %v503
    %v512 = vsub.f32 %v500, %v504
    %v513 = vsub.f32 %v501, %v505
    %v514 = vmul.f32 %v510, 1.442695
    %v515 = vpow.pop %v514
    %v516 = vmul.f32 %v511, 1.442695
    %v517 = vpow.pop %v516
    %v518 = vmul.f32 %v512, 1.442695
    %v519 = vpow.pop %v518
    %v520 = vmul.f32 %v513, 1.442695
    %v521 = vpow.pop %v520
    %v522 = vmul.f32 %v506, %v515
    %v523 = vmul.f32 %v507, %v517
    %v524 = vmul.f32 %v508, %v519
    %v525 = vmul.f32 %v509, %v521
    %527 = vset.pattern.permute.xlu0 0
    %528 = vperm.xlu0 %527, %v502
    %v529 = vpop.permute.xlu0 %528
    %532 = vset.pattern.permute.xlu0 0
    %533 = vperm.xlu0 %532, %v503
    %v534 = vpop.permute.xlu0 %533
    %537 = vset.pattern.permute.xlu0 0
    %538 = vperm.xlu0 %537, %v504
    %v539 = vpop.permute.xlu0 %538
    %542 = vset.pattern.permute.xlu0 0
    %543 = vperm.xlu0 %542, %v505
    %v544 = vpop.permute.xlu0 %543
    %v546 = vsub.f32 %v396, %v529
    %v547 = vsub.f32 %v415, %v529
    %v548 = vsub.f32 %v434, %v529
    %v549 = vsub.f32 %v453, %v529
    %v550 = vsub.f32 %v398, %v534
    %v551 = vsub.f32 %v417, %v534
    %v552 = vsub.f32 %v436, %v534
    %v553 = vsub.f32 %v455, %v534
    %v554 = vsub.f32 %v401, %v539
    %v555 = vsub.f32 %v420, %v539
    %v556 = vsub.f32 %v439, %v539
    %v557 = vsub.f32 %v458, %v539
    %v558 = vsub.f32 %v403, %v544
    %v559 = vsub.f32 %v422, %v544
    %v560 = vsub.f32 %v441, %v544
    %v561 = vsub.f32 %v460, %v544
    %v562 = vmul.f32 %v546, 1.442695
    %v563 = vpow.pop %v562
    %v564 = vmul.f32 %v547, 1.442695
    %v565 = vpow.pop %v564
    %v566 = vmul.f32 %v548, 1.442695
    %v567 = vpow.pop %v566
    %v568 = vmul.f32 %v549, 1.442695
    %v569 = vpow.pop %v568
    %v570 = vmul.f32 %v550, 1.442695
    %v571 = vpow.pop %v570
    %v572 = vmul.f32 %v551, 1.442695
    %v573 = vpow.pop %v572
    %v574 = vmul.f32 %v552, 1.442695
    %v575 = vpow.pop %v574
    %v576 = vmul.f32 %v553, 1.442695
    %v577 = vpow.pop %v576
    %v578 = vmul.f32 %v554, 1.442695
    %v579 = vpow.pop %v578
    %v580 = vmul.f32 %v555, 1.442695
    %v581 = vpow.pop %v580
    %v582 = vmul.f32 %v556, 1.442695
    %v583 = vpow.pop %v582
    %v584 = vmul.f32 %v557, 1.442695
    %v585 = vpow.pop %v584
    %v586 = vmul.f32 %v558, 1.442695
    %v587 = vpow.pop %v586
    %v588 = vmul.f32 %v559, 1.442695
    %v589 = vpow.pop %v588
    %v590 = vmul.f32 %v560, 1.442695
    %v591 = vpow.pop %v590
    %v592 = vmul.f32 %v561, 1.442695
    %v593 = vpow.pop %v592
    %v594 = vadd.f32 %v563, %v565
    %v595 = vadd.f32 %v594, %v567
    %v596 = vadd.f32 %v595, %v569
    %597 = vadd.xlane.f32.xlu0 %v596
    %v598 = vpop.xlane.xlu0 %597
    %v599 = vadd.f32 %v571, %v573
    %v600 = vadd.f32 %v599, %v575
    %v601 = vadd.f32 %v600, %v577
    %602 = vadd.xlane.f32.xlu0 %v601
    %v603 = vpop.xlane.xlu0 %602
    %v604 = vadd.f32 %v579, %v581
    %v605 = vadd.f32 %v604, %v583
    %v606 = vadd.f32 %v605, %v585
    %607 = vadd.xlane.f32.xlu0 %v606
    %v608 = vpop.xlane.xlu0 %607
    %v609 = vadd.f32 %v587, %v589
    %v610 = vadd.f32 %v609, %v591
    %v611 = vadd.f32 %v610, %v593
    %612 = vadd.xlane.f32.xlu0 %v611
    %v613 = vpop.xlane.xlu0 %612
    %v614 = vadd.f32 %v522, %v598
    %v615 = vadd.f32 %v523, %v603
    %v616 = vadd.f32 %v524, %v608
    %v617 = vadd.f32 %v525, %v613
    %vm618 = vcmask 7168
    %619 = vst.msk [vmem:[#allocation4] sm:$0xff] %vm618, %v614
    %620 = vst.msk [vmem:[#allocation4 + $0x8] sm:$0xff] %vm618, %v615
    %621 = vst.msk [vmem:[#allocation4 + $0x10] sm:$0xff] %vm618, %v616
    %622 = vst.msk [vmem:[#allocation4 + $0x18] sm:$0xff] %vm618, %v617
    %623 = vst.msk [vmem:[#allocation3] sm:$0xff] %vm618, %v502
    %624 = vst.msk [vmem:[#allocation3 + $0x8] sm:$0xff] %vm618, %v503
    %625 = vst.msk [vmem:[#allocation3 + $0x10] sm:$0xff] %vm618, %v504
    %626 = vst.msk [vmem:[#allocation3 + $0x18] sm:$0xff] %vm618, %v505
    %v627 = vlaneseq
    %v628 = vand.u32 %v627, 127
    %v629 = vadd.s32 %v628, 128
    %v630 = vadd.s32 %v628, 256
    %v631 = vadd.s32 %v628, 384
    %s632 = smul.u32 0, 512
    %v633 = vstv %s632
    %v634 = vadd.s32 %v628, %v633
    %v635 = vadd.s32 %v629, %v633
    %v636 = vadd.s32 %v630, %v633
    %v637 = vadd.s32 %v631, %v633
    %v638 = vld [vmem:[%s2] sm:$0xff]
    %v639 = vld [vmem:[%s2 + $0x8] sm:$0xff]
    %v640 = vld [vmem:[%s2 + $0x10] sm:$0xff]
    %v641 = vld [vmem:[%s2 + $0x18] sm:$0xff]
    %642 = vset.pattern.permute.xlu0 0
    %643 = vperm.xlu0 %642, %v638
    %v644 = vpop.permute.xlu0 %643
    %645 = vset.pattern.permute.xlu0 0
    %646 = vperm.xlu0 %645, %v639
    %v647 = vpop.permute.xlu0 %646
    %648 = vset.pattern.permute.xlu0 0
    %649 = vperm.xlu0 %648, %v640
    %v650 = vpop.permute.xlu0 %649
    %651 = vset.pattern.permute.xlu0 0
    %652 = vperm.xlu0 %651, %v641
    %v653 = vpop.permute.xlu0 %652
    %vm654 = vcmp.eq.s32.totalorder %v634, %v644
    %vm655 = vcmp.eq.s32.totalorder %v635, %v644
    %vm656 = vcmp.eq.s32.totalorder %v636, %v644
    %vm657 = vcmp.eq.s32.totalorder %v637, %v644
    %vm658 = vcmp.eq.s32.totalorder %v634, %v647
    %vm659 = vcmp.eq.s32.totalorder %v635, %v647
    %vm660 = vcmp.eq.s32.totalorder %v636, %v647
    %vm661 = vcmp.eq.s32.totalorder %v637, %v647
    %vm662 = vcmp.eq.s32.totalorder %v634, %v650
    %vm663 = vcmp.eq.s32.totalorder %v635, %v650
    %vm664 = vcmp.eq.s32.totalorder %v636, %v650
    %vm665 = vcmp.eq.s32.totalorder %v637, %v650
    %vm666 = vcmp.eq.s32.totalorder %v634, %v653
    %vm667 = vcmp.eq.s32.totalorder %v635, %v653
    %vm668 = vcmp.eq.s32.totalorder %v636, %v653
    %vm669 = vcmp.eq.s32.totalorder %v637, %v653
    %v670 = vld [vmem:[#allocation5] sm:$0xff]
    %v671 = vld [vmem:[#allocation5 + $0x8] sm:$0xff]
    %v672 = vld [vmem:[#allocation5 + $0x10] sm:$0xff]
    %v673 = vld [vmem:[#allocation5 + $0x18] sm:$0xff]
    %v674 = vsel %vm654, %v396, 0.0
    %v675 = vsel %vm655, %v415, 0.0
    %v676 = vsel %vm656, %v434, 0.0
    %v677 = vsel %vm657, %v453, 0.0
    %v678 = vsel %vm658, %v398, 0.0
    %v679 = vsel %vm659, %v417, 0.0
    %v680 = vsel %vm660, %v436, 0.0
    %v681 = vsel %vm661, %v455, 0.0
    %v682 = vsel %vm662, %v401, 0.0
    %v683 = vsel %vm663, %v420, 0.0
    %v684 = vsel %vm664, %v439, 0.0
    %v685 = vsel %vm665, %v458, 0.0
    %v686 = vsel %vm666, %v403, 0.0
    %v687 = vsel %vm667, %v422, 0.0
    %v688 = vsel %vm668, %v441, 0.0
    %v689 = vsel %vm669, %v460, 0.0
    %v690 = vadd.f32 %v674, %v675
    %v691 = vadd.f32 %v690, %v676
    %v692 = vadd.f32 %v691, %v677
    %693 = vadd.xlane.f32.xlu0 %v692
    %v694 = vpop.xlane.xlu0 %693
    %v695 = vadd.f32 %v678, %v679
    %v696 = vadd.f32 %v695, %v680
    %v697 = vadd.f32 %v696, %v681
    %698 = vadd.xlane.f32.xlu0 %v697
    %v699 = vpop.xlane.xlu0 %698
    %v700 = vadd.f32 %v682, %v683
    %v701 = vadd.f32 %v700, %v684
    %v702 = vadd.f32 %v701, %v685
    %703 = vadd.xlane.f32.xlu0 %v702
    %v704 = vpop.xlane.xlu0 %703
    %v705 = vadd.f32 %v686, %v687
    %v706 = vadd.f32 %v705, %v688
    %v707 = vadd.f32 %v706, %v689
    %708 = vadd.xlane.f32.xlu0 %v707
    %v709 = vpop.xlane.xlu0 %708
    %v710 = vadd.f32 %v670, %v694
    %v711 = vadd.f32 %v671, %v699
    %v712 = vadd.f32 %v672, %v704
    %v713 = vadd.f32 %v673, %v709
    %714 = vst.msk [vmem:[#allocation5] sm:$0xff] %vm618, %v710
    %715 = vst.msk [vmem:[#allocation5 + $0x8] sm:$0xff] %vm618, %v711
    %716 = vst.msk [vmem:[#allocation5 + $0x10] sm:$0xff] %vm618, %v712
    %717 = vst.msk [vmem:[#allocation5 + $0x18] sm:$0xff] %vm618, %v713
    // Predicated region
    $region18: #{cluster_memory_forward.1} parent=1 // pred_check
      %p718 = pneg %p17
    $region19: #{cluster_memory_forward.1} parent=1 // pred_check_branch
      %720 = sbr.rel (%p718) target = $region21
    $region20: #{cluster_memory_forward.1} parent=1 // pred_region
      %v721 = vld [vmem:[#allocation3] sm:$0xff]
      %v722 = vld [vmem:[#allocation3 + $0x8] sm:$0xff]
      %v723 = vld [vmem:[#allocation3 + $0x10] sm:$0xff]
      %v724 = vld [vmem:[#allocation3 + $0x18] sm:$0xff]
      %v725 = vld [vmem:[#allocation4] sm:$0xff]
      %v726 = vld [vmem:[#allocation4 + $0x8] sm:$0xff]
      %v727 = vld [vmem:[#allocation4 + $0x10] sm:$0xff]
      %v728 = vld [vmem:[#allocation4 + $0x18] sm:$0xff]
      %v729 = vlog2.pop %v725
      %v730 = vmul.f32 %v729, 0.6931472
      %v731 = vlog2.pop %v726
      %v732 = vmul.f32 %v731, 0.6931472
      %v733 = vlog2.pop %v727
      %v734 = vmul.f32 %v733, 0.6931472
      %v735 = vlog2.pop %v728
      %v736 = vmul.f32 %v735, 0.6931472
      %v737 = vadd.f32 %v721, %v730
      %v738 = vadd.f32 %v722, %v732
      %v739 = vadd.f32 %v723, %v734
      %v740 = vadd.f32 %v724, %v736
      %v741 = vld [vmem:[#allocation5] sm:$0xff]
      %v742 = vld [vmem:[#allocation5 + $0x8] sm:$0xff]
      %v743 = vld [vmem:[#allocation5 + $0x10] sm:$0xff]
      %v744 = vld [vmem:[#allocation5 + $0x18] sm:$0xff]
      %v745 = vsub.f32 %v737, %v741
      %v746 = vsub.f32 %v738, %v742
      %v747 = vsub.f32 %v739, %v743
      %v748 = vsub.f32 %v740, %v744
      %749 = vst.msk [vmem:[%s4] sm:$0xff] %vm618, %v745
      %750 = vst.msk [vmem:[%s4 + $0x8] sm:$0xff] %vm618, %v746
      %751 = vst.msk [vmem:[%s4 + $0x10] sm:$0xff] %vm618, %v747
      %752 = vst.msk [vmem:[%s4 + $0x18] sm:$0xff] %vm618, %v748
    $region21: #{cluster_memory_forward.1} parent=1 // pred_fallthru
      _
    // Predicated region
    $region22: #{cluster_memory_forward.1} parent=1 // pred_check
      _
    $region23: #{cluster_memory_forward.1} parent=1 // pred_check_branch
      %754 = sbr.rel (0) target = $region25
    $region24: #{cluster_memory_forward.1} parent=1 // pred_region
      %756 = vsyncadd [#allocation7], 0
      %s757 = sshll.u32 [#allocation6], 4
      %s758 = int_to_ptr.vmem [resolvable:$true] %s757
      %s759 = sshll.u32 %s3, 4
      %s760 = int_to_ptr.hbm [resolvable:$true] %s759
      %765 = dma.vmem_to_hbm [thread:$0]  %s758, 1024, %s760, [#allocation7], 256, 256, 16
    $region25: #{cluster_memory_forward.1} parent=1 // pred_fallthru
      _
    // Predicated region
    $region26: #{cluster_memory_forward.1} parent=1 // pred_check
      _
    $region27: #{cluster_memory_forward.1} parent=1 // pred_check_branch
      %767 = sbr.rel (0) target = $region29
    $region28: #{cluster_memory_forward.1} parent=1 // pred_region
      _
    $region29: #{cluster_memory_forward.1} parent=1 // pred_fallthru
      _
    // Predicated region
    $region30: #{cluster_memory_forward.1} parent=1 // pred_check
      _
    $region31: #{cluster_memory_forward.1} parent=1 // pred_check_branch
      %769 = sbr.rel (0) target = $region33
    $region32: #{cluster_memory_forward.1} parent=1 // pred_region
      %771 = dma.done [#allocation7], 1024
    $region33: #{cluster_memory_forward.1} parent=1 // pred_fallthru
      _
    // Predicated region
    $region34: #{cluster_memory_forward.1} parent=1 // pred_check
      _
    $region35: #{cluster_memory_forward.1} parent=1 // pred_check_branch
      %773 = sbr.rel (0) target = $region37
    $region36: #{cluster_memory_forward.1} parent=1 // pred_region
      _
    $region37: #{cluster_memory_forward.1} parent=1 // pred_fallthru
      _
    %774 = vsyncpa [#allocation7], 1

</llo_original>
